<compile_context>
chip_gen: v5e
topology: v5e:2x2
jax: 0.10.0
libtpu: 0.0.40
codegen_flags: <defaults>
</compile_context>

<pallas_src>
import jax
import jax.numpy as jnp
from jax.experimental import pallas as pl
from jax.experimental.pallas import tpu as pltpu


# ----------------------------- kernels ---------------------------------------


def _gap_rowsum_lane_dense_kernel(x_ref, o_ref):
    # x_ref: (row_tile, HW) native dtype; o_ref: (1, row_tile) f32, lane-dense.
    inv_hw = jnp.float32(1.0 / x_ref.shape[-1])
    s = jnp.sum(x_ref[...], axis=-1, dtype=jnp.float32, keepdims=True)   # (rt, 1)
    o_ref[...] = jnp.transpose(s) * inv_hw                               # (1, rt)


def _gap_rowsum_col_kernel(x_ref, o_ref):
    # Fallback output layout (known-good): o_ref: (row_tile, 1) f32.
    inv_hw = jnp.float32(1.0 / x_ref.shape[-1])
    o_ref[...] = jnp.sum(x_ref[...], axis=-1, dtype=jnp.float32, keepdims=True) * inv_hw


def _gap_packed_kernel(x_ref, ones_ref, o_ref):
    # x_ref: (row_tile, G*HW); ones_ref: (G*HW, G) block-diagonal ones;
    # o_ref: (row_tile, G) f32, lane-dense.  Segmented sum on the (idle) MXU.
    g = o_ref.shape[-1]
    hw = x_ref.shape[-1] // g
    acc = jnp.dot(x_ref[...], ones_ref[...], preferred_element_type=jnp.float32)
    o_ref[...] = acc * jnp.float32(1.0 / hw)


# ----------------------------- sizing helpers ---------------------------------


def _round_up(v, m):
    return ((v + m - 1) // m) * m


def _sublane_multiple(dtype):
    # Native packed sublane tile: (8,128) f32, (16,128) bf16/f16, (32,128) int8/fp8.
    return {1: 32, 2: 16, 4: 8}.get(jnp.dtype(dtype).itemsize, 8)


def _vmem_capacity_bytes():
    try:
        info = pltpu.get_tpu_info()
        cap = getattr(info, "vmem_capacity_bytes", None)
        if cap:
            return int(cap)
    except Exception:
        pass
    return 64 << 20   # conservative (v7x per-TC sized) default if the query fails


def _choose_row_tile(n_rows, per_row_bytes, in_row_bytes, sublane,
                     block_bytes_target, vmem_budget, fixed_bytes, hard_cap=8192):
    """Largest row tile that fits both the VMEM budget and the block target."""
    avail = max(vmem_budget - fixed_bytes, per_row_bytes * sublane)
    rt_budget = max(sublane, (avail // per_row_bytes) // sublane * sublane)
    rt_target = max(sublane, (block_bytes_target // max(in_row_bytes, 1)) // sublane * sublane)
    rt = min(rt_budget, rt_target, hard_cap)
    if rt >= n_rows:
        # Whole array fits in one block.  For mid/large inputs keep >= 2 grid
        # steps so the single "parallel" axis can be split across both
        # TensorCores on dual-TC chips (v7x); costs nothing on v5e/v6e.
        half = _round_up(pl.cdiv(n_rows, 2), sublane)
        rt = half if (n_rows * in_row_bytes > (1 << 20) and half < n_rows) else n_rows
    return rt


def _choose_group(bc, hw, itemsize, g_max, ones_budget_bytes):
    """Largest divisor of BC (<= g_max) whose block-diag ones matrix fits VMEM."""
    for g in range(min(g_max, bc), 7, -1):
        if bc % g:
            continue
        ones_bytes = _round_up(g * hw, 8) * _round_up(g, 128) * itemsize
        if ones_bytes <= ones_budget_bytes:
            return g
    return None


# ----------------------------- pallas_call builders ---------------------------


def _rowsum_call(xf, bc, hw, row_tile, vmem_limit_bytes, buffer_count, lane_dense):
    n_blocks = pl.cdiv(bc, row_tile)
    if buffer_count > 2:
        x_spec = pl.BlockSpec((row_tile, hw), lambda i: (i, 0),
                              pipeline_mode=pl.Buffered(buffer_count))
    else:
        x_spec = pl.BlockSpec((row_tile, hw), lambda i: (i, 0))
    if lane_dense:
        out_shape = jax.ShapeDtypeStruct((n_blocks, row_tile), jnp.float32)
        out_spec = pl.BlockSpec((1, row_tile), lambda i: (i, 0))
        kernel = _gap_rowsum_lane_dense_kernel
    else:
        out_shape = jax.ShapeDtypeStruct((bc, 1), jnp.float32)
        out_spec = pl.BlockSpec((row_tile, 1), lambda i: (i, 0))
        kernel = _gap_rowsum_col_kernel
    out = pl.pallas_call(
        kernel,
        out_shape=out_shape,
        grid_spec=pltpu.PrefetchScalarGridSpec(
            num_scalar_prefetch=0,
            grid=(n_blocks,),
            in_specs=[x_spec],
            out_specs=out_spec,
        ),
        compiler_params=pltpu.CompilerParams(
            dimension_semantics=("parallel",),
            vmem_limit_bytes=vmem_limit_bytes,
        ),
    )(xf)
    if lane_dense:
        return out.reshape(-1)[:bc]
    return out.reshape(-1)


def _packed_call(xg, ones_mat, n_rows, ghw, group, row_tile,
                 vmem_limit_bytes, buffer_count):
    n_blocks = pl.cdiv(n_rows, row_tile)
    if buffer_count > 2:
        x_spec = pl.BlockSpec((row_tile, ghw), lambda i: (i, 0),
                              pipeline_mode=pl.Buffered(buffer_count))
    else:
        x_spec = pl.BlockSpec((row_tile, ghw), lambda i: (i, 0))
    out = pl.pallas_call(
        _gap_packed_kernel,
        out_shape=jax.ShapeDtypeStruct((n_rows, group), jnp.float32),
        grid_spec=pltpu.PrefetchScalarGridSpec(
            num_scalar_prefetch=0,
            grid=(n_blocks,),
            in_specs=[
                x_spec,
                pl.BlockSpec((ghw, group), lambda i: (0, 0)),   # constant block: fetched once
            ],
            out_specs=pl.BlockSpec((row_tile, group), lambda i: (i, 0)),
        ),
        compiler_params=pltpu.CompilerParams(
            dimension_semantics=("parallel",),
            vmem_limit_bytes=vmem_limit_bytes,
        ),
    )(xg, ones_mat)
    return out.reshape(-1)


# ----------------------------- public wrapper ---------------------------------


def secure_global_average_pooling_2d(x, *, block_bytes_target=None,
                                     vmem_limit_bytes=None, input_buffer_count=2):
    """Global average pooling 2D: (B, C, H, W) -> (B, C, 1, 1)."""
    B, C, H, W = x.shape
    BC, HW = B * C, H * W
    itemsize = jnp.dtype(x.dtype).itemsize
    sub = _sublane_multiple(x.dtype)

    vmem_cap = _vmem_capacity_bytes()
    big_vmem = vmem_cap >= (96 << 20)             # v5e/v6e (128 MiB) vs v7x (64 MiB/TC)
    if vmem_limit_bytes is None:
        vmem_limit_bytes = (64 << 20) if big_vmem else (40 << 20)
    if block_bytes_target is None:
        block_bytes_target = (12 << 20) if big_vmem else (8 << 20)
    usable = int(vmem_limit_bytes * 0.7)          # headroom for Mosaic internals
    nbuf = max(2, int(input_buffer_count))
    # TODO(synk): on v7x, input_buffer_count=3 (pl.Buffered) further hides the
    # per-step overhead at 3.2 TB/s; default stays 2 for conservative VMEM use.

    mean_flat = None

    # ---- Packed small-HW path (MXU segmented sum). ---------------------------
    # For small non-128-aligned spatial sizes (e.g. 7x7 -> HW=49) a plain
    # (row, HW) tile makes every DMA destination row only ~HW*itemsize bytes,
    # so pack G whole channels per row (pure view of the contiguous buffer)
    # and reduce each HW segment with one MXU matmul against a block-diagonal
    # ones matrix; the (row_tile, G) output is already lane-dense.
    if HW % 128 != 0 and x.dtype in (jnp.dtype(jnp.float32), jnp.dtype(jnp.bfloat16)):
        group = _choose_group(BC, HW, itemsize, g_max=256,
                              ones_budget_bytes=vmem_limit_bytes // 8)
        if group is not None:
            n_rows = BC // group
            ghw = group * HW
            seg = jnp.arange(ghw, dtype=jnp.int32) // HW
            ones_mat = (seg[:, None] == jnp.arange(group, dtype=jnp.int32)[None, :]
                        ).astype(x.dtype)
            in_row = _round_up(ghw, 128) * itemsize
            out_row = _round_up(group, 128) * 4
            ones_vmem = _round_up(ghw, sub) * _round_up(group, 128) * itemsize
            per_row = nbuf * in_row + 3 * out_row        # in bufs + out bufs + f32 acc
            row_tile = _choose_row_tile(n_rows, per_row, in_row, sub,
                                        block_bytes_target, usable,
                                        fixed_bytes=2 * ones_vmem)
            xg = x.reshape(n_rows, ghw)                  # pure view of contiguous NCHW
            try:
                mean_flat = _packed_call(xg, ones_mat, n_rows, ghw, group,
                                         row_tile, vmem_limit_bytes, nbuf)
            except Exception:
                mean_flat = None                         # fall back to row-sum path

    # ---- Streaming row-sum path. ----------------------------------------------
    if mean_flat is None:
        xf = x.reshape(BC, HW)                           # pure view
        in_row = _round_up(HW, 128) * itemsize
        # N input buffers + f32 widen/working margin + lane-dense f32 out bufs.
        per_row = nbuf * in_row + _round_up(HW, 128) * 4 + 128
        row_tile = _choose_row_tile(BC, per_row, in_row, sub,
                                    block_bytes_target, usable, fixed_bytes=0)
        # TODO(synk): if even a single sublane-multiple of rows exceeds VMEM
        # (HW in the multi-million range), split HW onto a second "arbitrary"
        # grid axis with an f32 accumulator scratch; untypical for CNN GAP.
        try:
            mean_flat = _rowsum_call(xf, BC, HW, row_tile, vmem_limit_bytes,
                                     nbuf, lane_dense=True)
        except Exception:
            # Lane-dense (transposed) store failed to lower on this backend:
            # fall back to the known-good (BC, 1) output layout.
            mean_flat = _rowsum_call(xf, BC, HW, row_tile, vmem_limit_bytes,
                                     nbuf, lane_dense=False)

    out = mean_flat.reshape(B, C, 1, 1)
    # Match the original module's dtype behavior (same dtype in / out).  For
    # integer inputs this truncates the f32 mean (documented; floats round).
    return out.astype(x.dtype)


if __name__ == "__main__":
    key = jax.random.PRNGKey(0)
    k1, k2, k3, k4 = jax.random.split(key, 4)

    # --- Test 1: f32, HW multiple of 128, single full-row block (row-sum path). ---
    x1 = jax.random.normal(k1, (2, 4, 16, 16), dtype=jnp.float32)
    y1 = jax.block_until_ready(secure_global_average_pooling_2d(x1))
    r1 = jnp.mean(x1, axis=(2, 3), keepdims=True)
    assert y1.shape == (2, 4, 1, 1), y1.shape
    assert jnp.allclose(y1, r1, atol=1e-5, rtol=1e-5), "f32 mismatch vs reference"

    # --- Test 2: bf16, 7x7 spatial (HW=49, not 128-aligned) -> packed MXU path. ---
    x2 = jax.random.normal(k2, (2, 64, 7, 7), dtype=jnp.bfloat16)
    y2 = jax.block_until_ready(secure_global_average_pooling_2d(x2))
    r2 = jnp.mean(x2.astype(jnp.float32), axis=(2, 3), keepdims=True)
    assert y2.shape == (2, 64, 1, 1), y2.shape
    assert jnp.allclose(y2.astype(jnp.float32), r2, atol=2e-2, rtol=2e-2), \
        "bf16 packed-path mismatch vs reference"

    # --- Test 3: f32, ragged row blocks on the row-sum path (tiny block target). ---
    x3 = jax.random.normal(k3, (3, 11, 16, 8), dtype=jnp.float32)
    y3 = jax.block_until_ready(
        secure_global_average_pooling_2d(x3, block_bytes_target=8192))
    r3 = jnp.mean(x3, axis=(2, 3), keepdims=True)
    assert y3.shape == (3, 11, 1, 1), y3.shape
    assert jnp.allclose(y3, r3, atol=1e-5, rtol=1e-5), "ragged f32 mismatch vs reference"

    # --- Test 4: bf16 on the row-sum path (HW=256), full-array single block. ---
    x4 = jax.random.normal(k4, (2, 6, 16, 16), dtype=jnp.bfloat16)
    y4 = jax.block_until_ready(secure_global_average_pooling_2d(x4))
    r4 = jnp.mean(x4.astype(jnp.float32), axis=(2, 3), keepdims=True)
    assert y4.shape == (2, 6, 1, 1), y4.shape
    assert jnp.allclose(y4.astype(jnp.float32), r4, atol=2e-2, rtol=2e-2), \
        "bf16 row-sum mismatch vs reference"

    print("KERNEL_OK")
</pallas_src>

<mosaic_0001>
module attributes {stable_mosaic.version = 11 : i64} {
  func.func @_gap_rowsum_lane_dense_kernel(%arg0: i32, %arg1: memref<8x256xf32, #tpu.memory_space<vmem>>, %arg2: memref<1x8xf32, #tpu.memory_space<vmem>>) attributes {dimension_semantics = [#tpu.dimension_semantics<parallel>], iteration_bounds = array<i64: 1>, scalar_prefetch = 0 : i64, scratch_operands = 0 : i64, tpu.core_type = #tpu.core_type<tc>, window_params = [{transform_indices = @transform_0, window_bounds = array<i64: 8, 256>}, {transform_indices = @transform_1, window_bounds = array<i64: 1, 8>}]} {
    %c0 = arith.constant 0 : index
    %c0_0 = arith.constant 0 : index
    %0 = vector.load %arg1[%c0, %c0_0] : memref<8x256xf32, #tpu.memory_space<vmem>>, vector<8x256xf32>
    %cst = arith.constant dense<0.000000e+00> : vector<8xf32>
    %1 = vector.multi_reduction <add>, %0, %cst [1] : vector<8x256xf32> to vector<8xf32>
    %2 = vector.shape_cast %1 : vector<8xf32> to vector<8x1xf32>
    %3 = tpu.transpose %2, [1, 0] : vector<8x1xf32> -> vector<1x8xf32>
    %cst_1 = arith.constant 3.906250e-03 : f32
    %4 = vector.broadcast %cst_1 : f32 to vector<1x8xf32>
    %5 = arith.mulf %3, %4 : vector<1x8xf32>
    %c0_2 = arith.constant 0 : index
    %c0_3 = arith.constant 0 : index
    %6 = vector.load %arg2[%c0_2, %c0_3] : memref<1x8xf32, #tpu.memory_space<vmem>>, vector<1x8xf32>
    tpu.vector_store %arg2[%c0_2, %c0_3], %5 {strides = array<i32>} : memref<1x8xf32, #tpu.memory_space<vmem>>, vector<1x8xf32>,
    return
  }
  func.func @transform_0(%arg0: i32) -> (i32, i32) {
    %c0_i32 = arith.constant 0 : i32
    %c0_i32_0 = arith.constant 0 : i32
    return %arg0, %c0_i32 : i32, i32
  }
  func.func @transform_1(%arg0: i32) -> (i32, i32) {
    %c0_i32 = arith.constant 0 : i32
    %c0_i32_0 = arith.constant 0 : i32
    return %arg0, %c0_i32 : i32, i32
  }
}

module attributes {stable_mosaic.version = 11 : i64} {
  func.func @_gap_rowsum_col_kernel(%arg0: i32, %arg1: memref<8x256xf32, #tpu.memory_space<vmem>>, %arg2: memref<8x1xf32, #tpu.memory_space<vmem>>) attributes {dimension_semantics = [#tpu.dimension_semantics<parallel>], iteration_bounds = array<i64: 1>, scalar_prefetch = 0 : i64, scratch_operands = 0 : i64, tpu.core_type = #tpu.core_type<tc>, window_params = [{transform_indices = @transform_0, window_bounds = array<i64: 8, 256>}, {transform_indices = @transform_1, window_bounds = array<i64: 8, 1>}]} {
    %c0 = arith.constant 0 : index
    %c0_0 = arith.constant 0 : index
    %0 = vector.load %arg1[%c0, %c0_0] : memref<8x256xf32, #tpu.memory_space<vmem>>, vector<8x256xf32>
    %cst = arith.constant dense<0.000000e+00> : vector<8xf32>
    %1 = vector.multi_reduction <add>, %0, %cst [1] : vector<8x256xf32> to vector<8xf32>
    %2 = vector.shape_cast %1 : vector<8xf32> to vector<8x1xf32>
    %cst_1 = arith.constant 3.906250e-03 : f32
    %3 = vector.broadcast %cst_1 : f32 to vector<8x1xf32>
    %4 = arith.mulf %2, %3 : vector<8x1xf32>
    %c0_2 = arith.constant 0 : index
    %c0_3 = arith.constant 0 : index
    %5 = vector.load %arg2[%c0_2, %c0_3] : memref<8x1xf32, #tpu.memory_space<vmem>>, vector<8x1xf32>
    tpu.vector_store %arg2[%c0_2, %c0_3], %4 {strides = array<i32>} : memref<8x1xf32, #tpu.memory_space<vmem>>, vector<8x1xf32>,
    return
  }
  func.func @transform_0(%arg0: i32) -> (i32, i32) {
    %c0_i32 = arith.constant 0 : i32
    %c0_i32_0 = arith.constant 0 : i32
    return %arg0, %c0_i32 : i32, i32
  }
  func.func @transform_1(%arg0: i32) -> (i32, i32) {
    %c0_i32 = arith.constant 0 : i32
    %c0_i32_0 = arith.constant 0 : i32
    return %arg0, %c0_i32 : i32, i32
  }
}

</mosaic_0001>

<llo_original>
// kernel: tpu_custom_call.1
$region0: #{tpu_custom_call.1}
  #allocation0 [shape = 'u32[]', space=smem, size = 0x4, offset = 0x4, fixed_abs, tag = 'smem constant byte address 0x4 - core index']
  #allocation1 [shape = 'u32[72,128]{1,0:T(1,128)}', space=vmem, size = 0x9000, scoped, tag = 'internal scratch']
  %s0 = inlined_call_operand.hbm [shape: f32[8,256], index: 0, kind: input, shape index: {}]
  %s1 = inlined_call_operand.hbm [shape: f32[1,8], index: 1, kind: output, shape index: {}]
  %s2 = sld [smem:[#allocation0]]
  $region18: #{tpu_custom_call.1} parent=0
    _
  %s4 = ssub.s32 1, %s2
  %s5 = scalar_select 0, %s4, %s2
  $region1: #{tpu_custom_call.1} parent=0
    #allocation2 [shape = 'u8[8192]{0}', space=vmem, size = 0x2000, scoped, tag = 'input window, operand 0, single buffered']
    #allocation3 [shape = 's32[1]{0}', space=sflag, size = 0x4, scoped, tag = 'scoped memory for tpu_custom_call.1']
    #allocation4 [shape = 's32[1]{0}', space=sflag, size = 0x4, scoped, tag = 'scoped memory for tpu_custom_call.1']
    #allocation5 [shape = 'u8[512]{0}', space=vmem, size = 0x400, scoped, tag = 'output window, operand 0, single buffered']
    %6 = vsyncpa [#allocation3], 0
    %7 = vsyncpa [#allocation4], 0
    // Predicated region
    $region2: #{tpu_custom_call.1} parent=1 // pred_check
      _
    $region3: #{tpu_custom_call.1} parent=1 // pred_check_branch
      %9 = sbr.rel (0) target = $region5
    $region4: #{tpu_custom_call.1} parent=1 // pred_region
      %11 = vsyncadd [#allocation3], 0
      %s13 = sshll.u32 %s0, 4
      %s14 = int_to_ptr.hbm [resolvable:$true] %s13
      %s15 = sshll.u32 [#allocation2], 4
      %s16 = int_to_ptr.vmem [resolvable:$true] %s15
      %18 = dma.hbm_to_vmem [thread:$0]  %s14, 256, %s16, [#allocation3]
    $region5: #{tpu_custom_call.1} parent=1 // pred_fallthru
      _
    // Predicated region
    $region6: #{tpu_custom_call.1} parent=1 // pred_check
      _
    $region7: #{tpu_custom_call.1} parent=1 // pred_check_branch
      %20 = sbr.rel (0) target = $region9
    $region8: #{tpu_custom_call.1} parent=1 // pred_region
      %22 = dma.done [#allocation3], 256
    $region9: #{tpu_custom_call.1} parent=1 // pred_fallthru
      _
    %v23 = vld [vmem:[#allocation2] sm:$0xff]
    %v24 = vld [vmem:[#allocation2 + $0x8] sm:$0xff]
    %v25 = vadd.f32 %v23, %v24
    %26 = vadd.xlane.f32.xlu0 %v25
    %v27 = vpop.xlane.xlu0 %26
    %28 = vxpose.xlu0.b32.start [1/16] %v27, 128
    %29 = vxpose.xlu0.b32.cont [2/16] 0.0, 128
    %30 = vxpose.xlu0.b32.cont [3/16] 0.0, 128
    %31 = vxpose.xlu0.b32.cont [4/16] 0.0, 128
    %32 = vxpose.xlu0.b32.cont [5/16] 0.0, 128
    %33 = vxpose.xlu0.b32.cont [6/16] 0.0, 128
    %34 = vxpose.xlu0.b32.cont [7/16] 0.0, 128
    %35 = vxpose.xlu0.b32.cont [8/16] 0.0, 128
    %36 = vxpose.xlu0.b32.cont [9/16] 0.0, 128
    %37 = vxpose.xlu0.b32.cont [10/16] 0.0, 128
    %38 = vxpose.xlu0.b32.cont [11/16] 0.0, 128
    %39 = vxpose.xlu0.b32.cont [12/16] 0.0, 128
    %40 = vxpose.xlu0.b32.cont [13/16] 0.0, 128
    %41 = vxpose.xlu0.b32.cont [14/16] 0.0, 128
    %42 = vxpose.xlu0.b32.cont [15/16] 0.0, 128
    %43 = vxpose.xlu0.b32.end [16/16] 0.0, 128
    %v44 = vpop.trf.xlu0
    %v45 = vpop.trf.xlu0
    %v46 = vpop.trf.xlu0
    %v47 = vpop.trf.xlu0
    %v48 = vpop.trf.xlu0
    %v49 = vpop.trf.xlu0
    %v50 = vpop.trf.xlu0
    %v51 = vpop.trf.xlu0
    %v52 = vpop.trf.xlu0
    %v53 = vpop.trf.xlu0
    %v54 = vpop.trf.xlu0
    %v55 = vpop.trf.xlu0
    %v56 = vpop.trf.xlu0
    %v57 = vpop.trf.xlu0
    %v58 = vpop.trf.xlu0
    %v59 = vpop.trf.xlu0
    %v60 = vmul.f32 %v44, 0.00390625
    %vm61 = vcmask 57344
    %62 = vst.msk [vmem:[#allocation5] sm:$0x1] %vm61, %v60
    // Predicated region
    $region10: #{tpu_custom_call.1} parent=1 // pred_check
      _
    $region11: #{tpu_custom_call.1} parent=1 // pred_check_branch
      %64 = sbr.rel (0) target = $region13
    $region12: #{tpu_custom_call.1} parent=1 // pred_region
      %66 = vsyncadd [#allocation4], 0
      %s68 = sshll.u32 [#allocation5], 4
      %s69 = int_to_ptr.vmem [resolvable:$true] %s68
      %s70 = sshll.u32 %s1, 4
      %s71 = int_to_ptr.hbm [resolvable:$true] %s70
      %73 = dma.vmem_to_hbm [thread:$0]  %s69, 16, %s71, [#allocation4]
    $region13: #{tpu_custom_call.1} parent=1 // pred_fallthru
      _
    // Predicated region
    $region14: #{tpu_custom_call.1} parent=1 // pred_check
      _
    $region15: #{tpu_custom_call.1} parent=1 // pred_check_branch
      %75 = sbr.rel (0) target = $region17
    $region16: #{tpu_custom_call.1} parent=1 // pred_region
      %77 = dma.done [#allocation4], 16
    $region17: #{tpu_custom_call.1} parent=1 // pred_fallthru
      _
    %78 = vsyncpa [#allocation3], 1
    %79 = vsyncpa [#allocation4], 1

// kernel: tpu_custom_call.1
$region0: #{tpu_custom_call.1}
  #allocation0 [shape = 'u32[]', space=smem, size = 0x4, offset = 0x4, fixed_abs, tag = 'smem constant byte address 0x4 - core index']
  #allocation1 [shape = 'u32[72,128]{1,0:T(1,128)}', space=vmem, size = 0x9000, scoped, tag = 'internal scratch']
  %s0 = inlined_call_operand.hbm [shape: f32[8,256], index: 0, kind: input, shape index: {}]
  %s1 = inlined_call_operand.vmem [shape: f32[8,1], index: 1, kind: output, shape index: {}]
  %s2 = sld [smem:[#allocation0]]
  $region18: #{tpu_custom_call.1} parent=0
    _
  %s4 = ssub.s32 1, %s2
  %s5 = scalar_select 0, %s4, %s2
  $region1: #{tpu_custom_call.1} parent=0
    #allocation2 [shape = 'u8[8192]{0}', space=vmem, size = 0x2000, scoped, tag = 'input window, operand 0, single buffered']
    #allocation3 [shape = 's32[1]{0}', space=sflag, size = 0x4, scoped, tag = 'scoped memory for tpu_custom_call.1']
    %6 = vsyncpa [#allocation3], 0
    // Predicated region
    $region2: #{tpu_custom_call.1} parent=1 // pred_check
      _
    $region3: #{tpu_custom_call.1} parent=1 // pred_check_branch
      %8 = sbr.rel (0) target = $region5
    $region4: #{tpu_custom_call.1} parent=1 // pred_region
      %10 = vsyncadd [#allocation3], 0
      %s12 = sshll.u32 %s0, 4
      %s13 = int_to_ptr.hbm [resolvable:$true] %s12
      %s14 = sshll.u32 [#allocation2], 4
      %s15 = int_to_ptr.vmem [resolvable:$true] %s14
      %17 = dma.hbm_to_vmem [thread:$0]  %s13, 256, %s15, [#allocation3]
    $region5: #{tpu_custom_call.1} parent=1 // pred_fallthru
      _
    // Predicated region
    $region6: #{tpu_custom_call.1} parent=1 // pred_check
      _
    $region7: #{tpu_custom_call.1} parent=1 // pred_check_branch
      %19 = sbr.rel (0) target = $region9
    $region8: #{tpu_custom_call.1} parent=1 // pred_region
      %21 = dma.done [#allocation3], 256
    $region9: #{tpu_custom_call.1} parent=1 // pred_fallthru
      _
    %v22 = vld [vmem:[#allocation2] sm:$0xff]
    %v23 = vld [vmem:[#allocation2 + $0x8] sm:$0xff]
    %v24 = vadd.f32 %v22, %v23
    %25 = vadd.xlane.f32.xlu0 %v24
    %v26 = vpop.xlane.xlu0 %25
    %v27 = vmul.f32 %v26, 0.00390625
    %vm28 = vcmask 7168
    %29 = vst.msk [vmem:[%s1] sm:$0xff] %vm28, %v27
    // Predicated region
    $region10: #{tpu_custom_call.1} parent=1 // pred_check
      _
    $region11: #{tpu_custom_call.1} parent=1 // pred_check_branch
      %31 = sbr.rel (0) target = $region13
    $region12: #{tpu_custom_call.1} parent=1 // pred_region
      _
    $region13: #{tpu_custom_call.1} parent=1 // pred_fallthru
      _
    // Predicated region
    $region14: #{tpu_custom_call.1} parent=1 // pred_check
      _
    $region15: #{tpu_custom_call.1} parent=1 // pred_check_branch
      %33 = sbr.rel (0) target = $region17
    $region16: #{tpu_custom_call.1} parent=1 // pred_region
      _
    $region17: #{tpu_custom_call.1} parent=1 // pred_fallthru
      _
    %34 = vsyncpa [#allocation3], 1

</llo_original>
